<compile_context>
chip_gen: v7x
topology: tpu7x:2x2x1
jax: 0.10.0
libtpu: 0.0.40
codegen_flags: <defaults>
</compile_context>

<pallas_src>
import functools

import jax
import jax.numpy as jnp
from jax.experimental import pallas as pl
from jax.experimental.pallas import tpu as pltpu

PATCH = 4    # ConvNeXt stem: 4x4 conv, stride 4


def _round_up(x, m):
    return (x + m - 1) // m * m


def _pick_tile_m(m_rows, target):
    """Pick (tile_m, padded_M).

    Prefers a multiple-of-8 divisor of M (no row-pad pass over the patches)
    and caps the tile so the 1-D parallel grid has >= 2 steps, letting v7x's
    two TensorCores split the work.
    """
    if m_rows > 8:
        target = min(target, _round_up(-(-m_rows // 2), 8))   # >= 2 grid steps
    target = max(8, min(target, _round_up(m_rows, 8)))
    target -= target % 8
    target = max(target, 8)
    t = target
    while t >= 8:                       # trace-time loop, <= target/8 iters
        if m_rows % t == 0:
            return t, m_rows            # dividing tile: no padding pass
        t -= 8
    return target, _round_up(m_rows, target)


# ----------------------------------------------------------------------------
# Pallas kernel: patchify-conv as matmul + bias + channel LayerNorm (eps=1e-6)
# ----------------------------------------------------------------------------
def _stem_ln_kernel(p_ref, w_ref, bgb_ref, o_ref):
    # p_ref:   (TILE_M, K)     bf16 im2col patches (streamed over M)
    # w_ref:   (K, C_OUT)      bf16 conv weight (resident)
    # bgb_ref: (3, C_OUT)      f32  [bias; gamma; beta] (resident)
    # o_ref:   (TILE_M, C_OUT) output (bf16 by default)
    x = jnp.dot(p_ref[...], w_ref[...], preferred_element_type=jnp.float32)
    x = x + bgb_ref[0:1, :]                                   # conv bias

    c_out = x.shape[-1]
    inv_n = jnp.float32(1.0 / c_out)
    # LayerNorm stats over the (unpadded) channel axis. var = E[x^2] - mu^2
    # avoids a centered (TILE_M, C_OUT) temporary; clamp guards cancellation.
    mu = jnp.sum(x, axis=-1, keepdims=True) * inv_n
    ex2 = jnp.sum(x * x, axis=-1, keepdims=True) * inv_n
    var = jnp.maximum(ex2 - mu * mu, jnp.float32(0.0))
    xn = (x - mu) * jax.lax.rsqrt(var + jnp.float32(1e-6))
    o_ref[...] = (xn * bgb_ref[1:2, :] + bgb_ref[2:3, :]).astype(o_ref.dtype)


def _stem_ln_pallas(patches, w2d, bgb, *, tile_m, out_dtype):
    mp, k = patches.shape
    c_out = w2d.shape[1]
    assert mp % tile_m == 0 and tile_m % 8 == 0
    out_itemsize = jnp.dtype(out_dtype).itemsize

    bytes_accessed = (patches.size * 2          # bf16 patches stream
                      + w2d.size * 2            # bf16 weight (resident)
                      + bgb.size * 4            # bias/gamma/beta
                      + mp * c_out * out_itemsize)   # output stream

    return pl.pallas_call(
        _stem_ln_kernel,
        out_shape=jax.ShapeDtypeStruct((mp, c_out), out_dtype),
        grid_spec=pltpu.PrefetchScalarGridSpec(
            num_scalar_prefetch=0,
            grid=(mp // tile_m,),
            in_specs=[
                pl.BlockSpec((tile_m, k), lambda i: (i, 0)),   # patches: tiled over M
                pl.BlockSpec((k, c_out), lambda i: (0, 0)),    # weight: resident
                pl.BlockSpec((3, c_out), lambda i: (0, 0)),    # bias/gamma/beta: resident
            ],
            out_specs=pl.BlockSpec((tile_m, c_out), lambda i: (i, 0)),
        ),
        compiler_params=pltpu.CompilerParams(
            dimension_semantics=("parallel",),        # M-tiles are independent
            vmem_limit_bytes=32 * 1024 * 1024,        # safe on v5e/v6e/v7x
        ),
        cost_estimate=pl.CostEstimate(
            flops=2 * mp * k * c_out,
            transcendentals=mp,                       # one rsqrt per row
            bytes_accessed=bytes_accessed),
    )(patches, w2d, bgb)


# ----------------------------------------------------------------------------
# BackboneBase forward
# ----------------------------------------------------------------------------
def init_backbone_params(key, c_in, c_out):
    k_w, k_b, k_g = jax.random.split(key, 3)
    conv_w = jax.random.normal(k_w, (c_out, c_in, PATCH, PATCH), jnp.float32) * 0.05
    conv_b = jax.random.normal(k_b, (c_out,), jnp.float32) * 0.02
    ln_gamma = jnp.ones((c_out,), jnp.float32) + 0.01 * jax.random.normal(
        k_g, (c_out,), jnp.float32)
    ln_beta = jnp.zeros((c_out,), jnp.float32)
    return dict(conv_w=conv_w, conv_b=conv_b, ln_gamma=ln_gamma, ln_beta=ln_beta)


@functools.partial(jax.jit,
                   static_argnames=("tile_m", "channels_last", "out_dtype"))
def backbone_base_forward(params, tensors, mask, *, tile_m=4096,
                          channels_last=True, out_dtype=jnp.bfloat16):
    """Mirrors BackboneBase.forward.

    tensors: [B, C, H, W] float32 (NCHW, like PyTorch)
    mask:    [B, H, W]    bool
    returns: {'0': (features, downsampled mask)}; features are channels-last
             (B, Hf, Wf, C_out) by default (channels_last=False gives NCHW).
    """
    B, C, H, W = tensors.shape
    assert H % PATCH == 0 and W % PATCH == 0
    Hf, Wf = H // PATCH, W // PATCH
    c_out = params["conv_w"].shape[0]
    K = C * PATCH * PATCH
    M = B * Hf * Wf
    tm, Mp = _pick_tile_m(M, tile_m)

    # --- im2col patchify: one fused transpose + bf16-convert producer. ---
    # The final (M, K) view is a bitcast reshape of the transposed array.
    # TODO(synk): fold this into the kernel's input BlockSpec on the raw NCHW
    # tensor to remove the remaining wrapper-side HBM pass.
    x = tensors.reshape(B, C, Hf, PATCH, Wf, PATCH)
    x = jnp.transpose(x, (0, 2, 4, 1, 3, 5)).astype(jnp.bfloat16)
    patches = x.reshape(M, K)
    if Mp != M:
        # Rare (only when no multiple-of-8 divisor of M <= tile_m exists).
        # Padded rows LayerNorm a constant row: var=0 -> rsqrt(1e-6) finite,
        # output = beta; the rows are sliced off below.
        patches = jnp.pad(patches, ((0, Mp - M), (0, 0)))

    # Conv weight [C_out, C_in, P, P] -> matmul weight [K, C_out] (no lane pad).
    w2d = params["conv_w"].reshape(c_out, K).T.astype(jnp.bfloat16)
    bgb = jnp.stack([params["conv_b"], params["ln_gamma"], params["ln_beta"]],
                    axis=0).astype(jnp.float32)                   # (3, c_out)

    # --- Pallas hot path: conv-as-matmul + LayerNorm, tiled over M ---
    feat = _stem_ln_pallas(patches, w2d, bgb, tile_m=tm,
                           out_dtype=jnp.dtype(out_dtype))
    if Mp != M:
        feat = feat[:M]
    feat = feat.reshape(B, Hf, Wf, c_out)          # bitcast reshape, no depad pass

    if not channels_last:
        # TODO(synk): prefer channels-last consumers; this transpose is an
        # extra HBM round-trip kept only for exact PyTorch NCHW layout parity.
        feat = jnp.transpose(feat, (0, 3, 1, 2))

    # mask = F.interpolate(m[None].float(), size=(Hf,Wf)).bool()[0]
    # Default mode is 'nearest'; for an integer stride that is exactly a
    # strided slice (src = 4*dst) — no float round-trip, no gathers.
    mask_ds = mask[:, ::PATCH, ::PATCH]
    return {"0": (feat, mask_ds)}


# ----------------------------------------------------------------------------
# Reference (pure JAX) for a quick self-check
# ----------------------------------------------------------------------------
def _reference_forward(params, tensors, mask):
    # Mimic the kernel's bf16 MXU inputs so the comparison isolates
    # accumulation-order + bf16-output quantization differences.
    xb = tensors.astype(jnp.bfloat16).astype(jnp.float32)
    wb = params["conv_w"].astype(jnp.bfloat16).astype(jnp.float32)
    y = jax.lax.conv_general_dilated(
        xb, wb, window_strides=(PATCH, PATCH), padding="VALID",
        dimension_numbers=("NCHW", "OIHW", "NHWC"))
    y = y + params["conv_b"][None, None, None, :]
    mu = jnp.mean(y, axis=-1, keepdims=True)
    var = jnp.mean(jnp.square(y - mu), axis=-1, keepdims=True)
    yn = (y - mu) / jnp.sqrt(var + 1e-6)
    yn = yn * params["ln_gamma"] + params["ln_beta"]
    return yn, mask[:, ::PATCH, ::PATCH]


if __name__ == "__main__":
    key = jax.random.PRNGKey(0)
    k_par, k_img = jax.random.split(key, 2)

    B, C, H, W = 2, 3, 32, 32
    C_OUT = 32
    Hf, Wf = H // PATCH, W // PATCH

    params = init_backbone_params(k_par, C, C_OUT)
    tensors = jax.random.normal(k_img, (B, C, H, W), jnp.float32)
    # padding-style mask: True = padded region
    col = jnp.arange(W)[None, None, :]
    valid_w = jnp.array([W, W // 2])[:, None, None]
    mask = jnp.broadcast_to(col >= valid_w, (B, H, W))

    # Defaults: M = 128 -> tile picker gives tm=64, a 2-step parallel grid.
    out = backbone_base_forward(params, tensors, mask)
    xs, ds_mask = out["0"]
    jax.block_until_ready(xs)
    jax.block_until_ready(ds_mask)

    ref_xs, ref_mask = _reference_forward(params, tensors, mask)
    assert xs.shape == (B, Hf, Wf, C_OUT)
    assert xs.dtype == jnp.bfloat16
    assert ds_mask.shape == (B, Hf, Wf) and ds_mask.dtype == jnp.bool_
    # bf16 MXU inputs + bf16 output -> loose-ish tolerance on O(1) LN outputs.
    assert jnp.allclose(xs.astype(jnp.float32), ref_xs, atol=5e-2, rtol=5e-2)
    assert bool(jnp.all(ds_mask == ref_mask))

    # Optional NCHW path (matches the PyTorch layout exactly).
    xs_nchw = backbone_base_forward(params, tensors, mask,
                                    channels_last=False)["0"][0]
    jax.block_until_ready(xs_nchw)
    assert xs_nchw.shape == (B, C_OUT, Hf, Wf)
    assert jnp.allclose(xs_nchw.astype(jnp.float32),
                        jnp.transpose(ref_xs, (0, 3, 1, 2)),
                        atol=5e-2, rtol=5e-2)

    print("KERNEL_OK")
</pallas_src>

<mosaic_0001>
module attributes {stable_mosaic.version = 11 : i64} {
  func.func @_stem_ln_kernel(%arg0: i32, %arg1: memref<64x48xbf16, #tpu.memory_space<vmem>>, %arg2: memref<48x32xbf16, #tpu.memory_space<vmem>>, %arg3: memref<3x32xf32, #tpu.memory_space<vmem>>, %arg4: memref<64x32xbf16, #tpu.memory_space<vmem>>) attributes {dimension_semantics = [#tpu.dimension_semantics<parallel>], iteration_bounds = array<i64: 2>, scalar_prefetch = 0 : i64, scratch_operands = 0 : i64, tpu.core_type = #tpu.core_type<tc>, window_params = [{transform_indices = @transform_0, window_bounds = array<i64: 64, 48>}, {pipeline_mode = #tpu.pipeline_mode<synchronous>, transform_indices = @transform_1, window_bounds = array<i64: 48, 32>}, {pipeline_mode = #tpu.pipeline_mode<synchronous>, transform_indices = @transform_2, window_bounds = array<i64: 3, 32>}, {transform_indices = @transform_3, window_bounds = array<i64: 64, 32>}]} {
    %c0 = arith.constant 0 : index
    %c0_0 = arith.constant 0 : index
    %0 = vector.load %arg1[%c0, %c0_0] : memref<64x48xbf16, #tpu.memory_space<vmem>>, vector<64x48xbf16>
    %c0_1 = arith.constant 0 : index
    %c0_2 = arith.constant 0 : index
    %1 = vector.load %arg2[%c0_1, %c0_2] : memref<48x32xbf16, #tpu.memory_space<vmem>>, vector<48x32xbf16>
    %cst = arith.constant dense<0.000000e+00> : vector<64x32xf32>
    %2 = tpu.matmul %0, %1, %cst {dimension_numbers = #tpu.dot_dimension_numbers<[1], [0], [0], [1], [0, 0, 1, 1], [], []>} : vector<64x48xbf16>, vector<48x32xbf16>, vector<64x32xf32> -> vector<64x32xf32>
    %c0_3 = arith.constant 0 : index
    %c0_4 = arith.constant 0 : index
    %3 = vector.load %arg3[%c0_3, %c0_4] : memref<3x32xf32, #tpu.memory_space<vmem>>, vector<1x32xf32>
    %4 = vector.broadcast %3 : vector<1x32xf32> to vector<64x32xf32>
    %5 = arith.addf %2, %4 : vector<64x32xf32>
    %cst_5 = arith.constant dense<0.000000e+00> : vector<64xf32>
    %6 = vector.multi_reduction <add>, %5, %cst_5 [1] : vector<64x32xf32> to vector<64xf32>
    %7 = vector.shape_cast %6 : vector<64xf32> to vector<64x1xf32>
    %cst_6 = arith.constant 3.125000e-02 : f32
    %8 = vector.broadcast %cst_6 : f32 to vector<64x1xf32>
    %9 = arith.mulf %7, %8 : vector<64x1xf32>
    %10 = arith.mulf %5, %5 : vector<64x32xf32>
    %cst_7 = arith.constant dense<0.000000e+00> : vector<64xf32>
    %11 = vector.multi_reduction <add>, %10, %cst_7 [1] : vector<64x32xf32> to vector<64xf32>
    %12 = vector.shape_cast %11 : vector<64xf32> to vector<64x1xf32>
    %cst_8 = arith.constant 3.125000e-02 : f32
    %13 = vector.broadcast %cst_8 : f32 to vector<64x1xf32>
    %14 = arith.mulf %12, %13 : vector<64x1xf32>
    %15 = arith.mulf %9, %9 : vector<64x1xf32>
    %16 = arith.subf %14, %15 : vector<64x1xf32>
    %cst_9 = arith.constant 0.000000e+00 : f32
    %17 = vector.broadcast %cst_9 : f32 to vector<64x1xf32>
    %18 = arith.maximumf %16, %17 : vector<64x1xf32>
    %19 = vector.broadcast %9 : vector<64x1xf32> to vector<64x32xf32>
    %20 = arith.subf %5, %19 : vector<64x32xf32>
    %cst_10 = arith.constant 9.99999997E-7 : f32
    %21 = vector.broadcast %cst_10 : f32 to vector<64x1xf32>
    %22 = arith.addf %18, %21 : vector<64x1xf32>
    %23 = math.rsqrt %22 : vector<64x1xf32>
    %24 = vector.broadcast %23 : vector<64x1xf32> to vector<64x32xf32>
    %25 = arith.mulf %20, %24 : vector<64x32xf32>
    %c1 = arith.constant 1 : index
    %c0_11 = arith.constant 0 : index
    %26 = vector.load %arg3[%c1, %c0_11] : memref<3x32xf32, #tpu.memory_space<vmem>>, vector<1x32xf32>
    %27 = vector.broadcast %26 : vector<1x32xf32> to vector<64x32xf32>
    %28 = arith.mulf %25, %27 : vector<64x32xf32>
    %c2 = arith.constant 2 : index
    %c0_12 = arith.constant 0 : index
    %29 = vector.load %arg3[%c2, %c0_12] : memref<3x32xf32, #tpu.memory_space<vmem>>, vector<1x32xf32>
    %30 = vector.broadcast %29 : vector<1x32xf32> to vector<64x32xf32>
    %31 = arith.addf %28, %30 : vector<64x32xf32>
    %32 = arith.truncf %31 : vector<64x32xf32> to vector<64x32xbf16>
    %c0_13 = arith.constant 0 : index
    %c0_14 = arith.constant 0 : index
    %33 = vector.load %arg4[%c0_13, %c0_14] : memref<64x32xbf16, #tpu.memory_space<vmem>>, vector<64x32xbf16>
    tpu.vector_store %arg4[%c0_13, %c0_14], %32 {strides = array<i32>} : memref<64x32xbf16, #tpu.memory_space<vmem>>, vector<64x32xbf16>,
    return
  }
  func.func @transform_0(%arg0: i32) -> (i32, i32) {
    %c0_i32 = arith.constant 0 : i32
    %c0_i32_0 = arith.constant 0 : i32
    return %arg0, %c0_i32 : i32, i32
  }
  func.func @transform_1(%arg0: i32) -> (i32, i32) {
    %c0_i32 = arith.constant 0 : i32
    %c0_i32_0 = arith.constant 0 : i32
    %c0_i32_1 = arith.constant 0 : i32
    return %c0_i32, %c0_i32_0 : i32, i32
  }
  func.func @transform_2(%arg0: i32) -> (i32, i32) {
    %c0_i32 = arith.constant 0 : i32
    %c0_i32_0 = arith.constant 0 : i32
    %c0_i32_1 = arith.constant 0 : i32
    return %c0_i32, %c0_i32_0 : i32, i32
  }
  func.func @transform_3(%arg0: i32) -> (i32, i32) {
    %c0_i32 = arith.constant 0 : i32
    %c0_i32_0 = arith.constant 0 : i32
    return %arg0, %c0_i32 : i32, i32
  }
}

</mosaic_0001>

<llo_original>
// kernel: backbone_base_forward.1
$region0: #{backbone_base_forward.1}
  #allocation0 [shape = 'u32[]', space=smem, size = 0x4, offset = 0x4, fixed_abs, tag = 'smem constant byte address 0x4 - core index']
  #allocation1 [shape = 'u32[144,128]{1,0:T(1,128)}', space=vmem, size = 0x12000, scoped, tag = 'internal scratch']
  %s0 = inlined_call_operand.vmem [shape: bf16[128,48], index: 0, kind: input, shape index: {}]
  %s1 = inlined_call_operand.vmem [shape: bf16[48,32], index: 1, kind: input, shape index: {}]
  %s2 = inlined_call_operand.vmem [shape: f32[3,32], index: 2, kind: input, shape index: {}]
  %s3 = inlined_call_operand.hbm [shape: bf16[128,32], index: 3, kind: output, shape index: {}]
  %s4 = sld [smem:[#allocation0]]
  $region45: #{backbone_base_forward.1} parent=0
    _
  %s6 = ssub.s32 1, %s4
  %s7 = scalar_select 0, %s6, %s4
  $region1: #{backbone_base_forward.1} parent=0
    #allocation2 [shape = 'u8[32768]{0}', space=vmem, size = 0x8000, scoped, tag = 'output window, operand 0']
    #allocation3 [shape = 's32[2]{0}', space=sflag, size = 0x8, scoped, tag = 'scoped memory for backbone_base_forward.1']
    %8 = vsyncpa [#allocation3], 0
    %s9 = scalar_lea.sflag [#allocation3], 1
    %10 = vsyncpa %s9, 0
    loop: start=0, step=1, limit=4
    $region2: #{backbone_base_forward.1} parent=1 // loop_pre_header
      _
    $region3: #{backbone_base_forward.1} parent=1 // loop_header
      %s12 = sphi 0, %s16
      %p13 = scmp.ge.s32.totalorder %s12, 4
      %s22 = sphi 0, %s24
      %s25 = sphi 0, %s22
      %s26 = sphi 0, %s25
      %s42 = sphi 0, %s26
      %s46 = sphi 0, %s46
      %s48 = sphi 0, %s46
      %s49 = sphi 0, %s48
      %s63 = sphi 0, %s49
      %s67 = sphi 0, %s67
      %s69 = sphi 0, %s67
      %s70 = sphi 0, %s69
      %s84 = sphi 0, %s70
      %s90 = sphi 0, %s92
      %s93 = sphi 0, %s90
      %s94 = sphi 0, %s93
      %s110 = sphi 0, %s94
    $region4: #{backbone_base_forward.1} parent=1 // loop_header_branch
      %15 = sbr.rel (%p13) target = $region8
    $region5: #{backbone_base_forward.1} parent=1 // loop_body
      %s17 = ssub.s32 %s12, 1
      %s18 = ssub.s32 %s12, 2
      %s19 = sadd.s32 %s12, 1
      %s20 = ssub.s32 %s12, %s19
      %p21 = scmp.eq.s32.totalorder %s20, 0
      %s23 = sadd.s32 %s22, 1
      %s24 = scalar_select %p21, %s22, %s23
      %p27 = pneg %p21
      %p28 = scmp.eq.s32.totalorder %s12, 1
      %p29 = por %p27, %p28
      %p30 = scmp.ne.s32.totalorder %s22, %s25
      %p31 = scmp.eq.s32.totalorder %s12, 0
      %p32 = por %p30, %p31
      %p33 = scmp.ne.s32.totalorder %s22, %s25
      %p34 = scmp.eq.s32.totalorder %s17, 1
      %p35 = por %p33, %p34
      %p36 = scmp.ne.s32.totalorder %s25, %s26
      %p37 = scmp.eq.s32.totalorder %s17, 0
      %p38 = por %p36, %p37
      %p39 = scmp.ne.s32.totalorder %s25, %s26
      %p40 = scmp.eq.s32.totalorder %s18, 1
      %p41 = por %p39, %p40
      %p43 = scmp.ne.s32.totalorder %s26, %s42
      %p44 = scmp.eq.s32.totalorder %s18, 0
      %p45 = por %p43, %p44
      %s47 = sadd.s32 %s46, 1
      %p50 = scmp.eq.s32.totalorder %s12, 1
      %p51 = scmp.ne.s32.totalorder %s46, %s48
      %p52 = scmp.eq.s32.totalorder %s12, 0
      %p53 = por %p51, %p52
      %p54 = scmp.ne.s32.totalorder %s46, %s48
      %p55 = scmp.eq.s32.totalorder %s17, 1
      %p56 = por %p54, %p55
      %p57 = scmp.ne.s32.totalorder %s48, %s49
      %p58 = scmp.eq.s32.totalorder %s17, 0
      %p59 = por %p57, %p58
      %p60 = scmp.ne.s32.totalorder %s48, %s49
      %p61 = scmp.eq.s32.totalorder %s18, 1
      %p62 = por %p60, %p61
      %p64 = scmp.ne.s32.totalorder %s49, %s63
      %p65 = scmp.eq.s32.totalorder %s18, 0
      %p66 = por %p64, %p65
      %s68 = sadd.s32 %s67, 1
      %p71 = scmp.eq.s32.totalorder %s12, 1
      %p72 = scmp.ne.s32.totalorder %s67, %s69
      %p73 = scmp.eq.s32.totalorder %s12, 0
      %p74 = por %p72, %p73
      %p75 = scmp.ne.s32.totalorder %s67, %s69
      %p76 = scmp.eq.s32.totalorder %s17, 1
      %p77 = por %p75, %p76
      %p78 = scmp.ne.s32.totalorder %s69, %s70
      %p79 = scmp.eq.s32.totalorder %s17, 0
      %p80 = por %p78, %p79
      %p81 = scmp.ne.s32.totalorder %s69, %s70
      %p82 = scmp.eq.s32.totalorder %s18, 1
      %p83 = por %p81, %p82
      %p85 = scmp.ne.s32.totalorder %s70, %s84
      %p86 = scmp.eq.s32.totalorder %s18, 0
      %p87 = por %p85, %p86
      %s88 = ssub.s32 %s12, %s19
      %p89 = scmp.eq.s32.totalorder %s88, 0
      %s91 = sadd.s32 %s90, 1
      %s92 = scalar_select %p89, %s90, %s91
      %p95 = pneg %p89
      %p96 = scmp.eq.s32.totalorder %s12, 1
      %p97 = por %p95, %p96
      %p98 = scmp.ne.s32.totalorder %s90, %s93
      %p99 = scmp.eq.s32.totalorder %s12, 0
      %p100 = por %p98, %p99
      %p101 = scmp.ne.s32.totalorder %s90, %s93
      %p102 = scmp.eq.s32.totalorder %s17, 1
      %p103 = por %p101, %p102
      %p104 = scmp.ne.s32.totalorder %s93, %s94
      %p105 = scmp.eq.s32.totalorder %s17, 0
      %p106 = por %p104, %p105
      %p107 = scmp.ne.s32.totalorder %s93, %s94
      %p108 = scmp.eq.s32.totalorder %s18, 1
      %p109 = por %p107, %p108
      %p111 = scmp.ne.s32.totalorder %s94, %s110
      %p112 = scmp.eq.s32.totalorder %s18, 0
      %p113 = por %p111, %p112
      %p114 = scmp.le.s32.totalorder 1, %s12
      %p115 = scmp.lt.s32.totalorder %s12, 3
      %p116 = pnand %p114, %p115
      %p117 = pneg %p116
      // Predicated region
      $region9: #{backbone_base_forward.1} parent=5 // pred_check
        _
      $region10: #{backbone_base_forward.1} parent=5 // pred_check_branch
        %119 = sbr.rel (%p116) target = $region12
      $region11: #{backbone_base_forward.1} parent=5 // pred_region
        %s120 = ssub.s32 %s12, 1
        // Predicated region
        $region13: #{backbone_base_forward.1} parent=11 // pred_check
          %p121 = pneg %p59
        $region14: #{backbone_base_forward.1} parent=11 // pred_check_branch
          %123 = sbr.rel (%p121) target = $region16
        $region15: #{backbone_base_forward.1} parent=11 // pred_region
          _
        $region16: #{backbone_base_forward.1} parent=11 // pred_fallthru
          _
        // Predicated region
        $region17: #{backbone_base_forward.1} parent=11 // pred_check
          %p124 = pneg %p80
        $region18: #{backbone_base_forward.1} parent=11 // pred_check_branch
          %126 = sbr.rel (%p124) target = $region20
        $region19: #{backbone_base_forward.1} parent=11 // pred_region
          _
        $region20: #{backbone_base_forward.1} parent=11 // pred_fallthru
          _
      $region12: #{backbone_base_forward.1} parent=5 // pred_fallthru
        _
      %p127 = scmp.lt.s32.totalorder %s12, 2
      // Predicated region
      $region21: #{backbone_base_forward.1} parent=5 // pred_check
        %p128 = pneg %p127
      $region22: #{backbone_base_forward.1} parent=5 // pred_check_branch
        %130 = sbr.rel (%p128) target = $region24
      $region23: #{backbone_base_forward.1} parent=5 // pred_region
        // Predicated region
        $region25: #{backbone_base_forward.1} parent=23 // pred_check
          %p131 = pneg %p32
        $region26: #{backbone_base_forward.1} parent=23 // pred_check_branch
          %133 = sbr.rel (%p131) target = $region28
        $region27: #{backbone_base_forward.1} parent=23 // pred_region
          %s134 = smul.u32 8, %s12
          %p135 = scmp.lt.s32.totalorder %s134, 15
          %s136 = scalar_select %p135, %s134, 15
          %s137 = smul.addr %s136, 4
          %s138 = scalar_lea.vmem %s0, %s137
          %s139 = smul.u32 8, %s12
        $region28: #{backbone_base_forward.1} parent=23 // pred_fallthru
          _
      $region24: #{backbone_base_forward.1} parent=5 // pred_fallthru
        _
      %p140 = scmp.le.s32.totalorder 1, %s12
      %p141 = scmp.lt.s32.totalorder %s12, 3
      %p142 = pnand %p140, %p141
      %p143 = pneg %p142
      // Predicated region
      $region29: #{backbone_base_forward.1} parent=5 // pred_check
        _
      $region30: #{backbone_base_forward.1} parent=5 // pred_check_branch
        %145 = sbr.rel (%p142) target = $region32
      $region31: #{backbone_base_forward.1} parent=5 // pred_region
        %s146 = ssub.s32 %s12, 1
        %s147 = smul.u32 8, %s17
        %p148 = scmp.lt.s32.totalorder %s147, 15
        %s149 = scalar_select %p148, %s147, 15
        %s150 = smul.addr %s149, 4
        %s151 = scalar_lea.vmem %s0, %s150
        %p152 = pneg %p38
        %p153 = pneg %p35
        %p154 = pneg %p59
        %p155 = pneg %p56
        %p156 = pneg %p80
        %p157 = pneg %p77
        %p158 = pneg %p106
        %p159 = pneg %p103
        %s160 = sand.u32 %s93, 1
        %s161 = scalar_lea.sflag [#allocation3], %s160
        %s162 = sand.u32 %s93, 1
        %s163 = smul.addr %s162, 32
        %s164 = scalar_lea.vmem [#allocation2], %s163
        %s165 = smul.u32 8, %s17
        %p166 = scmp.lt.s32.totalorder %s165, 15
        %s167 = scalar_select %p166, %s165, 15
        %s168 = smul.addr %s167, 4
        %s169 = scalar_lea.vmem %s0, %s168
        %s170 = smul.u32 8, %s17
        %s171 = smul.u32 8, %s17
        %v173 = vld [vmem:[%s169] sm:$0xf]
        %v174 = vld [vmem:[%s169 + $0x4] sm:$0xf]
        %v175 = vld [vmem:[%s169 + $0x8] sm:$0xf]
        %v176 = vld [vmem:[%s169 + $0xc] sm:$0xf]
        %v177 = vld [vmem:[%s169 + $0x10] sm:$0xf]
        %v178 = vld [vmem:[%s169 + $0x14] sm:$0xf]
        %v179 = vld [vmem:[%s169 + $0x18] sm:$0xf]
        %v180 = vld [vmem:[%s169 + $0x1c] sm:$0xf]
        %v181 = vld [vmem:[%s1] sm:$0xf]
        %v182 = vld [vmem:[%s1 + $0x4] sm:$0xf]
        %v183 = vld [vmem:[%s1 + $0x8] sm:$0xf]
        %v184 = vld [vmem:[%s1 + $0xc] sm:$0xf]
        %v185 = vld [vmem:[%s1 + $0x10] sm:$0xf]
        %v186 = vld [vmem:[%s1 + $0x14] sm:$0xf]
        %v187 = vld [vmem:[%s2] sm:$0x1]
        %v188 = vlaneseq
        %v189 = vshrl.u32 %v188, 7
        %v190 = vsub.s32 0, %v189
        %v191 = vrot.slane %v187, %v190
        %v200 = vunpack.c.l.b16 %v173
        %v201 = vunpack.c.l.b16 %v174
        %v202 = vunpack.c.l.b16 %v175
        %v203 = vunpack.c.l.b16 %v176
        %v204 = vunpack.c.l.b16 %v177
        %v205 = vunpack.c.l.b16 %v178
        %v206 = vunpack.c.l.b16 %v179
        %v207 = vunpack.c.l.b16 %v180
        %v208 = vpack.c.b16 %v201, %v200
        %v209 = vpack.c.b16 %v203, %v202
        %v210 = vpack.c.b16 %v205, %v204
        %v211 = vpack.c.b16 %v207, %v206
        %v218 = vunpack.c.l.b16 %v181
        %v219 = vunpack.c.l.b16 %v182
        %v220 = vunpack.c.l.b16 %v183
        %v221 = vunpack.c.l.b16 %v184
        %v222 = vunpack.c.l.b16 %v185
        %v223 = vunpack.c.l.b16 %v186
        %v224 = vpack.c.b16 %v219, %v218
        %v225 = vpack.c.b16 %v221, %v220
        %v226 = vpack.c.b16 %v223, %v222
        %vm230 = vcmask 392192
        %v232 = vsel %vm230, %v208, 0
        %v235 = vsel %vm230, %v209, 0
        %v238 = vsel %vm230, %v210, 0
        %v241 = vsel %vm230, %v211, 0
        %243 = vmatprep.subr.bf16.mxu0 0
        %244 = vmatpush1.bf16.msra.mxu0 %v224
        %245 = vmatprep.subr.bf16.mxu0 0
        %246 = vmatpush1.bf16.msra.mxu0 %v225
        %247 = vmatprep.subr.bf16.mxu0 0
        %248 = vmatpush1.bf16.msra.mxu0 %v226
        %249 = vmatprep.subr.bf16.mxu0 0
        %250 = vmatpush1.bf16.msra.mxu0 0
        %251 = vmatprep.subr.bf16.mxu0 0
        %252 = vmatpush1.bf16.msra.mxu0 0
        %253 = vmatprep.subr.bf16.mxu0 0
        %254 = vmatpush1.bf16.msra.mxu0 0
        %255 = vmatprep.subr.bf16.mxu0 0
        %256 = vmatpush1.bf16.msra.mxu0 0
        %257 = vmatprep.subr.bf16.mxu0 0
        %258 = vmatpush1.bf16.msra.mxu0 0
        %259 = vmatprep.subr.bf16.mxu0 0
        %260 = vmatpush1.bf16.msra.mxu0 0
        %261 = vmatprep.subr.bf16.mxu0 0
        %262 = vmatpush1.bf16.msra.mxu0 0
        %263 = vmatprep.subr.bf16.mxu0 0
        %264 = vmatpush1.bf16.msra.mxu0 0
        %265 = vmatprep.subr.bf16.mxu0 0
        %266 = vmatpush1.bf16.msra.mxu0 0
        %267 = vmatprep.subr.bf16.mxu0 0
        %268 = vmatpush1.bf16.msra.mxu0 0
        %269 = vmatprep.subr.bf16.mxu0 0
        %270 = vmatpush1.bf16.msra.mxu0 0
        %271 = vmatprep.subr.bf16.mxu0 0
        %272 = vmatpush1.bf16.msra.mxu0 0
        %273 = vmatprep.subr.bf16.mxu0 0
        %274 = vmatpush1.bf16.msra.mxu0 0
        %275 = vmatprep.mubr.bf16.mxu0 0
        %276 = vmatmul.mubr.bf16.gmra.mrb[0].mxu0 %v232
        %v277 = vpop.f32.mrb[0].mxu0
        %v278 = vadd.f32 %v191, %v277
        %v279 = vpop.f32.mrb[0].mxu0
        %v280 = vpop.f32.mrb[0].mxu0
        %v281 = vadd.f32 %v191, %v280
        %v282 = vpop.f32.mrb[0].mxu0
        %283 = vmatprep.mubr.bf16.mxu0 0
        %284 = vmatmul.mubr.bf16.gmra.mrb[0].mxu0 %v235
        %v285 = vpop.f32.mrb[0].mxu0
        %v286 = vadd.f32 %v191, %v285
        %v287 = vpop.f32.mrb[0].mxu0
        %v288 = vpop.f32.mrb[0].mxu0
        %v289 = vadd.f32 %v191, %v288
        %v290 = vpop.f32.mrb[0].mxu0
        %291 = vmatprep.mubr.bf16.mxu0 0
        %292 = vmatmul.mubr.bf16.gmra.mrb[0].mxu0 %v238
        %v293 = vpop.f32.mrb[0].mxu0
        %v294 = vadd.f32 %v191, %v293
        %v295 = vpop.f32.mrb[0].mxu0
        %v296 = vpop.f32.mrb[0].mxu0
        %v297 = vadd.f32 %v191, %v296
        %v298 = vpop.f32.mrb[0].mxu0
        %299 = vmatprep.mubr.bf16.mxu0 0
        %300 = vmatmul.mubr.bf16.gmra.mrb[0].mxu0 %v241
        %v301 = vpop.f32.mrb[0].mxu0
        %v302 = vadd.f32 %v191, %v301
        %v303 = vpop.f32.mrb[0].mxu0
        %v304 = vpop.f32.mrb[0].mxu0
        %v305 = vadd.f32 %v191, %v304
        %v306 = vpop.f32.mrb[0].mxu0
        %307 = vdwg.mxu0
        %vm308 = vcmask 261120
        %v309 = vsel %vm308, %v278, 0.0
        %310 = vadd.xlane.f32.xlu0 %v309
        %v311 = vpop.xlane.xlu0 %310
        %v312 = vsel %vm308, %v281, 0.0
        %313 = vadd.xlane.f32.xlu0 %v312
        %v314 = vpop.xlane.xlu0 %313
        %v315 = vsel %vm308, %v286, 0.0
        %316 = vadd.xlane.f32.xlu0 %v315
        %v317 = vpop.xlane.xlu0 %316
        %v318 = vsel %vm308, %v289, 0.0
        %319 = vadd.xlane.f32.xlu0 %v318
        %v320 = vpop.xlane.xlu0 %319
        %v321 = vsel %vm308, %v294, 0.0
        %322 = vadd.xlane.f32.xlu0 %v321
        %v323 = vpop.xlane.xlu0 %322
        %v324 = vsel %vm308, %v297, 0.0
        %325 = vadd.xlane.f32.xlu0 %v324
        %v326 = vpop.xlane.xlu0 %325
        %v327 = vsel %vm308, %v302, 0.0
        %328 = vadd.xlane.f32.xlu0 %v327
        %v329 = vpop.xlane.xlu0 %328
        %v330 = vsel %vm308, %v305, 0.0
        %331 = vadd.xlane.f32.xlu0 %v330
        %v332 = vpop.xlane.xlu0 %331
        %v333 = vmul.f32 %v311, 0.03125
        %v334 = vmul.f32 %v314, 0.03125
        %v335 = vmul.f32 %v317, 0.03125
        %v336 = vmul.f32 %v320, 0.03125
        %v337 = vmul.f32 %v323, 0.03125
        %v338 = vmul.f32 %v326, 0.03125
        %v339 = vmul.f32 %v329, 0.03125
        %v340 = vmul.f32 %v332, 0.03125
        %v341 = vmul.f32 %v278, %v278
        %v342 = vmul.f32 %v281, %v281
        %v343 = vmul.f32 %v286, %v286
        %v344 = vmul.f32 %v289, %v289
        %v345 = vmul.f32 %v294, %v294
        %v346 = vmul.f32 %v297, %v297
        %v347 = vmul.f32 %v302, %v302
        %v348 = vmul.f32 %v305, %v305
        %v349 = vsel %vm308, %v341, 0.0
        %350 = vadd.xlane.f32.xlu0 %v349
        %v351 = vpop.xlane.xlu0 %350
        %v352 = vsel %vm308, %v342, 0.0
        %353 = vadd.xlane.f32.xlu0 %v352
        %v354 = vpop.xlane.xlu0 %353
        %v355 = vsel %vm308, %v343, 0.0
        %356 = vadd.xlane.f32.xlu0 %v355
        %v357 = vpop.xlane.xlu0 %356
        %v358 = vsel %vm308, %v344, 0.0
        %359 = vadd.xlane.f32.xlu0 %v358
        %v360 = vpop.xlane.xlu0 %359
        %v361 = vsel %vm308, %v345, 0.0
        %362 = vadd.xlane.f32.xlu0 %v361
        %v363 = vpop.xlane.xlu0 %362
        %v364 = vsel %vm308, %v346, 0.0
        %365 = vadd.xlane.f32.xlu0 %v364
        %v366 = vpop.xlane.xlu0 %365
        %v367 = vsel %vm308, %v347, 0.0
        %368 = vadd.xlane.f32.xlu0 %v367
        %v369 = vpop.xlane.xlu0 %368
        %v370 = vsel %vm308, %v348, 0.0
        %371 = vadd.xlane.f32.xlu0 %v370
        %v372 = vpop.xlane.xlu0 %371
        %v373 = vmul.f32 %v351, 0.03125
        %v374 = vmul.f32 %v354, 0.03125
        %v375 = vmul.f32 %v357, 0.03125
        %v376 = vmul.f32 %v360, 0.03125
        %v377 = vmul.f32 %v363, 0.03125
        %v378 = vmul.f32 %v366, 0.03125
        %v379 = vmul.f32 %v369, 0.03125
        %v380 = vmul.f32 %v372, 0.03125
        %v381 = vmul.f32 %v333, %v333
        %v382 = vmul.f32 %v334, %v334
        %v383 = vmul.f32 %v335, %v335
        %v384 = vmul.f32 %v336, %v336
        %v385 = vmul.f32 %v337, %v337
        %v386 = vmul.f32 %v338, %v338
        %v387 = vmul.f32 %v339, %v339
        %v388 = vmul.f32 %v340, %v340
        %v389 = vsub.f32 %v373, %v381
        %v390 = vsub.f32 %v374, %v382
        %v391 = vsub.f32 %v375, %v383
        %v392 = vsub.f32 %v376, %v384
        %v393 = vsub.f32 %v377, %v385
        %v394 = vsub.f32 %v378, %v386
        %v395 = vsub.f32 %v379, %v387
        %v396 = vsub.f32 %v380, %v388
        %v397 = vmax.f32 %v389, 0.0
        %v398 = vmax.f32 %v390, 0.0
        %v399 = vmax.f32 %v391, 0.0
        %v400 = vmax.f32 %v392, 0.0
        %v401 = vmax.f32 %v393, 0.0
        %v402 = vmax.f32 %v394, 0.0
        %v403 = vmax.f32 %v395, 0.0
        %v404 = vmax.f32 %v396, 0.0
        %v405 = vsub.f32 %v278, %v333
        %v406 = vsub.f32 %v281, %v334
        %v407 = vsub.f32 %v286, %v335
        %v408 = vsub.f32 %v289, %v336
        %v409 = vsub.f32 %v294, %v337
        %v410 = vsub.f32 %v297, %v338
        %v411 = vsub.f32 %v302, %v339
        %v412 = vsub.f32 %v305, %v340
        %v413 = vadd.f32 %v397, 1e-06
        %v414 = vadd.f32 %v398, 1e-06
        %v415 = vadd.f32 %v399, 1e-06
        %v416 = vadd.f32 %v400, 1e-06
        %v417 = vadd.f32 %v401, 1e-06
        %v418 = vadd.f32 %v402, 1e-06
        %v419 = vadd.f32 %v403, 1e-06
        %v420 = vadd.f32 %v404, 1e-06
        %v421 = vrsqrt.pop %v413
        %v422 = vrsqrt.pop %v414
        %v423 = vrsqrt.pop %v415
        %v424 = vrsqrt.pop %v416
        %v425 = vrsqrt.pop %v417
        %v426 = vrsqrt.pop %v418
        %v427 = vrsqrt.pop %v419
        %v428 = vrsqrt.pop %v420
        %v429 = vmul.f32 %v405, %v421
        %v430 = vmul.f32 %v406, %v422
        %v431 = vmul.f32 %v407, %v423
        %v432 = vmul.f32 %v408, %v424
        %v433 = vmul.f32 %v409, %v425
        %v434 = vmul.f32 %v410, %v426
        %v435 = vmul.f32 %v411, %v427
        %v436 = vmul.f32 %v412, %v428
        %v437 = vld [vmem:[%s2 + $0x1] sm:$0x1]
        %v438 = vlaneseq
        %v439 = vshrl.u32 %v438, 7
        %v440 = vsub.s32 0, %v439
        %v441 = vrot.slane %v437, %v440
        %v442 = vmul.f32 %v429, %v441
        %v443 = vmul.f32 %v430, %v441
        %v444 = vmul.f32 %v431, %v441
        %v445 = vmul.f32 %v432, %v441
        %v446 = vmul.f32 %v433, %v441
        %v447 = vmul.f32 %v434, %v441
        %v448 = vmul.f32 %v435, %v441
        %v449 = vmul.f32 %v436, %v441
        %v450 = vld [vmem:[%s2 + $0x2] sm:$0x1]
        %v451 = vlaneseq
        %v452 = vshrl.u32 %v451, 7
        %v453 = vsub.s32 0, %v452
        %v454 = vrot.slane %v450, %v453
        %v455 = vadd.f32 %v442, %v454
        %v456 = vadd.f32 %v443, %v454
        %v457 = vadd.f32 %v444, %v454
        %v458 = vadd.f32 %v445, %v454
        %v459 = vadd.f32 %v446, %v454
        %v460 = vadd.f32 %v447, %v454
        %v461 = vadd.f32 %v448, %v454
        %v462 = vadd.f32 %v449, %v454
        %v463 = vpack.c.bf16 %v456, %v455
        %v464 = vpack.c.bf16 %v458, %v457
        %v465 = vpack.c.bf16 %v460, %v459
        %v466 = vpack.c.bf16 %v462, %v461
        %v471 = vunpack.c.l.b16 %v463
        %v472 = vunpack.c.h.b16 %v463
        %v473 = vunpack.c.l.b16 %v464
        %v474 = vunpack.c.h.b16 %v464
        %v475 = vunpack.c.l.b16 %v465
        %v476 = vunpack.c.h.b16 %v465
        %v477 = vunpack.c.l.b16 %v466
        %v478 = vunpack.c.h.b16 %v466
        %v479 = vpack.c.b16 %v471, %v471
        %v480 = vpack.c.b16 %v472, %v472
        %v481 = vpack.c.b16 %v473, %v473
        %v482 = vpack.c.b16 %v474, %v474
        %v483 = vpack.c.b16 %v475, %v475
        %v484 = vpack.c.b16 %v476, %v476
        %v485 = vpack.c.b16 %v477, %v477
        %v486 = vpack.c.b16 %v478, %v478
        %vm495 = vcmask 257024
        %496 = vst.msk [vmem:[%s164] sm:$0xf] %vm495, %v479
        %497 = vst.msk [vmem:[%s164 + $0x4] sm:$0xf] %vm495, %v480
        %498 = vst.msk [vmem:[%s164 + $0x8] sm:$0xf] %vm495, %v481
        %499 = vst.msk [vmem:[%s164 + $0xc] sm:$0xf] %vm495, %v482
        %500 = vst.msk [vmem:[%s164 + $0x10] sm:$0xf] %vm495, %v483
        %501 = vst.msk [vmem:[%s164 + $0x14] sm:$0xf] %vm495, %v484
        %502 = vst.msk [vmem:[%s164 + $0x18] sm:$0xf] %vm495, %v485
        %503 = vst.msk [vmem:[%s164 + $0x1c] sm:$0xf] %vm495, %v486
        %s504 = sand.u32 %s93, 1
        %s505 = scalar_lea.sflag [#allocation3], %s504
        %s506 = sand.u32 %s93, 1
        %s507 = smul.addr %s506, 32
        %s508 = scalar_lea.vmem [#allocation2], %s507
        // Predicated region
        $region33: #{backbone_base_forward.1} parent=31 // pred_check
          %p509 = pneg %p103
        $region34: #{backbone_base_forward.1} parent=31 // pred_check_branch
          %511 = sbr.rel (%p509) target = $region36
        $region35: #{backbone_base_forward.1} parent=31 // pred_region
          %s512 = smul.u32 8, %s17
          %s514 = ssub.s32 512, 512
          %515 = vsyncadd %s505, %s514
          %s516 = smul.addr %s512, 64
          %s517 = scalar_lea.hbm %s3, %s516
          %s518 = sshll.u32 %s508, 4
          %s519 = int_to_ptr.vmem [resolvable:$true] %s518
          %524 = dma.vmem_to_hbm [thread:$0]  %s519, 512, %s517, %s505, 64, 64, 4
        $region36: #{backbone_base_forward.1} parent=31 // pred_fallthru
          _
      $region32: #{backbone_base_forward.1} parent=5 // pred_fallthru
        _
      %p525 = scmp.le.s32.totalorder 2, %s12
      // Predicated region
      $region37: #{backbone_base_forward.1} parent=5 // pred_check
        %p526 = pneg %p525
      $region38: #{backbone_base_forward.1} parent=5 // pred_check_branch
        %528 = sbr.rel (%p526) target = $region40
      $region39: #{backbone_base_forward.1} parent=5 // pred_region
        %s529 = ssub.s32 %s12, 2
        // Predicated region
        $region41: #{backbone_base_forward.1} parent=39 // pred_check
          %p530 = pneg %p109
        $region42: #{backbone_base_forward.1} parent=39 // pred_check_branch
          %532 = sbr.rel (%p530) target = $region44
        $region43: #{backbone_base_forward.1} parent=39 // pred_region
          %s533 = sand.u32 %s94, 1
          %s534 = scalar_lea.sflag [#allocation3], %s533
          %s535 = sand.u32 %s94, 1
          %s536 = smul.addr %s535, 32
          %s537 = scalar_lea.vmem [#allocation2], %s536
          %538 = dma.done %s534, 512
        $region44: #{backbone_base_forward.1} parent=39 // pred_fallthru
          _
      $region40: #{backbone_base_forward.1} parent=5 // pred_fallthru
        _
    $region6: #{backbone_base_forward.1} parent=1 // loop_footer
      %s16 = sadd.s32 1, %s12
    $region7: #{backbone_base_forward.1} parent=1 // loop_footer_branch
      %11 = sbr.rel target = $region3
    $region8: #{backbone_base_forward.1} parent=1 // loop_exit
      _
    %539 = vsyncpa [#allocation3], 1
    %s540 = scalar_lea.sflag [#allocation3], 1
    %541 = vsyncpa %s540, 1

</llo_original>
